<compile_context>
chip_gen: v7x
topology: tpu7x:2x2x1
jax: 0.10.0
libtpu: 0.0.40
codegen_flags: <defaults>
</compile_context>

<pallas_src>
import functools

import jax
import jax.numpy as jnp
from jax.experimental import pallas as pl
from jax.experimental.pallas import tpu as pltpu


def _round_up(x, m):
    return (x + m - 1) // m * m


def _fused_heads_kernel(x_ref, w_ref, b_ref, o_ref):
    # One MXU matmul over the padded, lane-dense class axis; bias add in f32.
    acc = jnp.dot(x_ref[...], w_ref[...], preferred_element_type=jnp.float32)
    o_ref[...] = (acc + b_ref[...]).astype(o_ref.dtype)


def _pick_block_b(batch, f_pad, c_pad, x_itemsize, out_itemsize,
                  budget_bytes=24 << 20, max_tb=512):
    """Largest batch tile (multiple of 8, <= max_tb) fitting the VMEM budget.

    Budget accounts for: 2x double-buffered x tiles + resident W_cat +
    resident bias + 2x double-buffered output tiles.  24 MiB keeps headroom
    under v7x's 32 MiB default scoped VMEM.
    """
    tb = min(max_tb, _round_up(batch, 8))
    while tb > 8:
        need = (2 * tb * f_pad * x_itemsize
                + f_pad * c_pad * 4
                + 2 * c_pad * 4
                + 2 * tb * c_pad * out_itemsize)
        if need <= budget_bytes:
            break
        tb = _round_up(tb // 2, 8)
    return max(tb, 8)


@jax.jit
def fused_multi_head(x, w_cat, b_cat):
    """Compute x @ w_cat + b_cat (all heads at once) with one Pallas kernel.

    x:     (B, F)
    w_cat: (F, C_total)   -- concatenated transposed PyTorch weights
    b_cat: (1, C_total)   -- concatenated biases
    returns (B, C_total) float32
    """
    B, F = x.shape
    _, C = w_cat.shape
    out_dtype = jnp.float32

    # Lane-dense padding: contraction dim and class dim to multiples of 128.
    Fp = _round_up(F, 128)
    Cp = _round_up(C, 128)

    TB = _pick_block_b(B, Fp, Cp,
                       jnp.dtype(x.dtype).itemsize,
                       jnp.dtype(out_dtype).itemsize)
    Bp = _round_up(B, TB)

    # Zero-padding the contraction dim contributes 0 to the matmul; padded
    # class columns are garbage and are sliced off below.
    x_p = jnp.pad(x, ((0, Bp - B), (0, Fp - F)))
    w_p = jnp.pad(w_cat, ((0, Fp - F), (0, Cp - C)))
    b_p = jnp.pad(b_cat, ((0, 0), (0, Cp - C)))

    grid = (pl.cdiv(Bp, TB),)

    cost = pl.CostEstimate(
        flops=2 * B * F * C,
        transcendentals=0,
        bytes_accessed=(x.size * jnp.dtype(x.dtype).itemsize
                        + w_cat.size * jnp.dtype(w_cat.dtype).itemsize
                        + b_cat.size * jnp.dtype(b_cat.dtype).itemsize
                        + B * C * jnp.dtype(out_dtype).itemsize),
    )

    out_p = pl.pallas_call(
        _fused_heads_kernel,
        out_shape=jax.ShapeDtypeStruct((Bp, Cp), out_dtype),
        grid=grid,
        in_specs=[
            pl.BlockSpec((TB, Fp), lambda i: (i, 0)),   # x tile, pipelined
            pl.BlockSpec((Fp, Cp), lambda i: (0, 0)),   # W_cat, resident
            pl.BlockSpec((1, Cp), lambda i: (0, 0)),    # bias, resident
        ],
        out_specs=pl.BlockSpec((TB, Cp), lambda i: (i, 0)),
        compiler_params=pltpu.CompilerParams(
            dimension_semantics=("parallel",),          # v7x: split over 2 TCs
        ),
        cost_estimate=cost,
    )(x_p, w_p, b_p)

    return out_p[:B, :C]


class MultiTaskHeadPallas:
    """JAX/Pallas equivalent of the PyTorch MultiTaskHead module.

    Forward semantics match: returns a list of per-head outputs, each
    equal to nn.Linear(n_features, n_classes)(x) for that head.
    """

    def __init__(self, n_features, n_classes_list, key):
        self.n_features = n_features
        self.n_classes_list = list(n_classes_list)
        w_blocks = []
        b_blocks = []
        self.per_head = []  # (w_t, b) kept for reference checking
        for n_classes in self.n_classes_list:
            key, wk, bk = jax.random.split(key, 3)
            # Deterministic init mimicking nn.Linear's uniform(-bound, bound).
            bound = 1.0 / jnp.sqrt(jnp.asarray(n_features, jnp.float32))
            w = jax.random.uniform(
                wk, (n_classes, n_features), jnp.float32, -bound, bound
            )
            b = jax.random.uniform(
                bk, (n_classes,), jnp.float32, -bound, bound
            )
            w_t = w.T                              # (F, C)
            b_row = b.reshape(1, n_classes)        # (1, C)
            self.per_head.append((w_t, b_row))
            w_blocks.append(w_t)
            b_blocks.append(b_row)

        # Fused parameters: one matmul for all heads.
        self.w_cat = jnp.concatenate(w_blocks, axis=1)   # (F, sum(C))
        self.b_cat = jnp.concatenate(b_blocks, axis=1)   # (1, sum(C))

        # Per-head column slices of the fused output.
        self.slices = []
        off = 0
        for c in self.n_classes_list:
            self.slices.append((off, off + c))
            off += c

    def __call__(self, x):
        fused = fused_multi_head(x, self.w_cat, self.b_cat)
        return [fused[:, lo:hi] for (lo, hi) in self.slices]


if __name__ == "__main__":
    key = jax.random.PRNGKey(0)
    key, xk, pk = jax.random.split(key, 3)

    batch = 8
    n_features = 32
    n_classes_list = [10, 5, 3]

    x = jax.random.normal(xk, (batch, n_features), jnp.float32)

    model = MultiTaskHeadPallas(n_features, n_classes_list, pk)
    outs = model(x)
    outs = [jax.block_until_ready(o) for o in outs]

    # Reference check against plain JAX to verify semantics.
    refs = [x @ w_t + b for (w_t, b) in model.per_head]
    for o, r, c in zip(outs, refs, n_classes_list):
        assert o.shape == (batch, c), o.shape
        assert jnp.max(jnp.abs(o - r)) < 1e-4, "mismatch vs reference"

    print("KERNEL_OK")
</pallas_src>

<mosaic_0001>
module attributes {stable_mosaic.version = 11 : i64} {
  func.func @_fused_heads_kernel(%arg0: i32, %arg1: memref<8x128xf32, #tpu.memory_space<vmem>>, %arg2: memref<128x128xf32, #tpu.memory_space<vmem>>, %arg3: memref<1x128xf32, #tpu.memory_space<vmem>>, %arg4: memref<8x128xf32, #tpu.memory_space<vmem>>) attributes {dimension_semantics = [#tpu.dimension_semantics<parallel>], iteration_bounds = array<i64: 1>, scalar_prefetch = 0 : i64, scratch_operands = 0 : i64, tpu.core_type = #tpu.core_type<tc>, window_params = [{transform_indices = @transform_0, window_bounds = array<i64: 8, 128>}, {pipeline_mode = #tpu.pipeline_mode<synchronous>, transform_indices = @transform_1, window_bounds = array<i64: 128, 128>}, {pipeline_mode = #tpu.pipeline_mode<synchronous>, transform_indices = @transform_2, window_bounds = array<i64: 1, 128>}, {transform_indices = @transform_3, window_bounds = array<i64: 8, 128>}]} {
    %c0 = arith.constant 0 : index
    %c0_0 = arith.constant 0 : index
    %0 = vector.load %arg1[%c0, %c0_0] : memref<8x128xf32, #tpu.memory_space<vmem>>, vector<8x128xf32>
    %c0_1 = arith.constant 0 : index
    %c0_2 = arith.constant 0 : index
    %1 = vector.load %arg2[%c0_1, %c0_2] : memref<128x128xf32, #tpu.memory_space<vmem>>, vector<128x128xf32>
    %cst = arith.constant dense<0.000000e+00> : vector<8x128xf32>
    %2 = tpu.matmul %0, %1, %cst {dimension_numbers = #tpu.dot_dimension_numbers<[1], [0], [0], [1], [0, 0, 1, 1], [], []>} : vector<8x128xf32>, vector<128x128xf32>, vector<8x128xf32> -> vector<8x128xf32>
    %c0_3 = arith.constant 0 : index
    %c0_4 = arith.constant 0 : index
    %3 = vector.load %arg3[%c0_3, %c0_4] : memref<1x128xf32, #tpu.memory_space<vmem>>, vector<1x128xf32>
    %4 = vector.broadcast %3 : vector<1x128xf32> to vector<8x128xf32>
    %5 = arith.addf %2, %4 : vector<8x128xf32>
    %c0_5 = arith.constant 0 : index
    %c0_6 = arith.constant 0 : index
    %6 = vector.load %arg4[%c0_5, %c0_6] : memref<8x128xf32, #tpu.memory_space<vmem>>, vector<8x128xf32>
    tpu.vector_store %arg4[%c0_5, %c0_6], %5 {strides = array<i32>} : memref<8x128xf32, #tpu.memory_space<vmem>>, vector<8x128xf32>,
    return
  }
  func.func @transform_0(%arg0: i32) -> (i32, i32) {
    %c0_i32 = arith.constant 0 : i32
    %c0_i32_0 = arith.constant 0 : i32
    return %arg0, %c0_i32 : i32, i32
  }
  func.func @transform_1(%arg0: i32) -> (i32, i32) {
    %c0_i32 = arith.constant 0 : i32
    %c0_i32_0 = arith.constant 0 : i32
    %c0_i32_1 = arith.constant 0 : i32
    return %c0_i32, %c0_i32_0 : i32, i32
  }
  func.func @transform_2(%arg0: i32) -> (i32, i32) {
    %c0_i32 = arith.constant 0 : i32
    %c0_i32_0 = arith.constant 0 : i32
    %c0_i32_1 = arith.constant 0 : i32
    return %c0_i32, %c0_i32_0 : i32, i32
  }
  func.func @transform_3(%arg0: i32) -> (i32, i32) {
    %c0_i32 = arith.constant 0 : i32
    %c0_i32_0 = arith.constant 0 : i32
    return %arg0, %c0_i32 : i32, i32
  }
}

</mosaic_0001>

<llo_original>
// kernel: fused_multi_head.1
$region0: #{fused_multi_head.1}
  #allocation0 [shape = 'u32[]', space=smem, size = 0x4, offset = 0x4, fixed_abs, tag = 'smem constant byte address 0x4 - core index']
  #allocation1 [shape = 'u32[144,128]{1,0:T(1,128)}', space=vmem, size = 0x12000, scoped, tag = 'internal scratch']
  %s0 = inlined_call_operand.vmem [shape: f32[8,128], index: 0, kind: input, shape index: {}]
  %s1 = inlined_call_operand.vmem [shape: f32[128,128], index: 1, kind: input, shape index: {}]
  %s2 = inlined_call_operand.vmem [shape: f32[1,128], index: 2, kind: input, shape index: {}]
  %s3 = inlined_call_operand.hbm [shape: f32[8,128], index: 3, kind: output, shape index: {}]
  %s4 = sld [smem:[#allocation0]]
  $region22: #{fused_multi_head.1} parent=0
    _
  %s6 = ssub.s32 1, %s4
  %s7 = scalar_select 0, %s6, %s4
  $region1: #{fused_multi_head.1} parent=0
    #allocation2 [shape = 'u8[4096]{0}', space=vmem, size = 0x1000, scoped, tag = 'output window, operand 0, single buffered']
    #allocation3 [shape = 's32[1]{0}', space=sflag, size = 0x4, scoped, tag = 'scoped memory for fused_multi_head.1']
    %8 = vsyncpa [#allocation3], 0
    // Predicated region
    $region2: #{fused_multi_head.1} parent=1 // pred_check
      _
    $region3: #{fused_multi_head.1} parent=1 // pred_check_branch
      %10 = sbr.rel (0) target = $region5
    $region4: #{fused_multi_head.1} parent=1 // pred_region
      _
    $region5: #{fused_multi_head.1} parent=1 // pred_fallthru
      _
    // Predicated region
    $region6: #{fused_multi_head.1} parent=1 // pred_check
      _
    $region7: #{fused_multi_head.1} parent=1 // pred_check_branch
      %12 = sbr.rel (0) target = $region9
    $region8: #{fused_multi_head.1} parent=1 // pred_region
      _
    $region9: #{fused_multi_head.1} parent=1 // pred_fallthru
      _
    // Predicated region
    $region10: #{fused_multi_head.1} parent=1 // pred_check
      _
    $region11: #{fused_multi_head.1} parent=1 // pred_check_branch
      %14 = sbr.rel (0) target = $region13
    $region12: #{fused_multi_head.1} parent=1 // pred_region
      _
    $region13: #{fused_multi_head.1} parent=1 // pred_fallthru
      _
    %v15 = vld [vmem:[%s0] sm:$0xff]
    %v16 = vld [vmem:[%s1] sm:$0xff]
    %v17 = vld [vmem:[%s1 + $0x8] sm:$0xff]
    %v18 = vld [vmem:[%s1 + $0x10] sm:$0xff]
    %v19 = vld [vmem:[%s1 + $0x18] sm:$0xff]
    %v20 = vld [vmem:[%s1 + $0x20] sm:$0xff]
    %v21 = vld [vmem:[%s1 + $0x28] sm:$0xff]
    %v22 = vld [vmem:[%s1 + $0x30] sm:$0xff]
    %v23 = vld [vmem:[%s1 + $0x38] sm:$0xff]
    %v24 = vld [vmem:[%s1 + $0x40] sm:$0xff]
    %v25 = vld [vmem:[%s1 + $0x48] sm:$0xff]
    %v26 = vld [vmem:[%s1 + $0x50] sm:$0xff]
    %v27 = vld [vmem:[%s1 + $0x58] sm:$0xff]
    %v28 = vld [vmem:[%s1 + $0x60] sm:$0xff]
    %v29 = vld [vmem:[%s1 + $0x68] sm:$0xff]
    %v30 = vld [vmem:[%s1 + $0x70] sm:$0xff]
    %v31 = vld [vmem:[%s1 + $0x78] sm:$0xff]
    %v32 = vld [vmem:[%s2] sm:$0x1]
    %v34 = vlaneseq
    %v35 = vshrl.u32 %v34, 7
    %v36 = vsub.s32 0, %v35
    %v37 = vrot.slane %v32, %v36
    %39 = vmatprep.subr.mxu0 0.0
    %40 = vmatpush1.msra.mxu0 %v16
    %41 = vmatprep.subr.mxu0 0.0
    %42 = vmatpush1.msra.mxu0 %v17
    %43 = vmatprep.subr.mxu0 0.0
    %44 = vmatpush1.msra.mxu0 %v18
    %45 = vmatprep.subr.mxu0 0.0
    %46 = vmatpush1.msra.mxu0 %v19
    %47 = vmatprep.subr.mxu0 0.0
    %48 = vmatpush1.msra.mxu0 %v20
    %49 = vmatprep.subr.mxu0 0.0
    %50 = vmatpush1.msra.mxu0 %v21
    %51 = vmatprep.subr.mxu0 0.0
    %52 = vmatpush1.msra.mxu0 %v22
    %53 = vmatprep.subr.mxu0 0.0
    %54 = vmatpush1.msra.mxu0 %v23
    %55 = vmatprep.subr.mxu0 0.0
    %56 = vmatpush1.msra.mxu0 %v24
    %57 = vmatprep.subr.mxu0 0.0
    %58 = vmatpush1.msra.mxu0 %v25
    %59 = vmatprep.subr.mxu0 0.0
    %60 = vmatpush1.msra.mxu0 %v26
    %61 = vmatprep.subr.mxu0 0.0
    %62 = vmatpush1.msra.mxu0 %v27
    %63 = vmatprep.subr.mxu0 0.0
    %64 = vmatpush1.msra.mxu0 %v28
    %65 = vmatprep.subr.mxu0 0.0
    %66 = vmatpush1.msra.mxu0 %v29
    %67 = vmatprep.subr.mxu0 0.0
    %68 = vmatpush1.msra.mxu0 %v30
    %69 = vmatprep.subr.mxu0 0.0
    %70 = vmatpush1.msra.mxu0 %v31
    %71 = vmatprep.subr.mxu0 0.0
    %72 = vmatpush1.msra.mxu0 0.0
    %73 = vmatprep.subr.mxu0 0.0
    %74 = vmatpush1.msra.mxu0 0.0
    %75 = vmatprep.subr.mxu0 0.0
    %76 = vmatpush1.msra.mxu0 0.0
    %77 = vmatprep.subr.mxu0 0.0
    %78 = vmatpush1.msra.mxu0 0.0
    %79 = vmatprep.subr.mxu0 0.0
    %80 = vmatpush1.msra.mxu0 0.0
    %81 = vmatprep.subr.mxu0 0.0
    %82 = vmatpush1.msra.mxu0 0.0
    %83 = vmatprep.subr.mxu0 0.0
    %84 = vmatpush1.msra.mxu0 0.0
    %85 = vmatprep.subr.mxu0 0.0
    %86 = vmatpush1.msra.mxu0 0.0
    %87 = vmatprep.subr.mxu0 0.0
    %88 = vmatpush1.msra.mxu0 0.0
    %89 = vmatprep.subr.mxu0 0.0
    %90 = vmatpush1.msra.mxu0 0.0
    %91 = vmatprep.subr.mxu0 0.0
    %92 = vmatpush1.msra.mxu0 0.0
    %93 = vmatprep.subr.mxu0 0.0
    %94 = vmatpush1.msra.mxu0 0.0
    %95 = vmatprep.subr.mxu0 0.0
    %96 = vmatpush1.msra.mxu0 0.0
    %97 = vmatprep.subr.mxu0 0.0
    %98 = vmatpush1.msra.mxu0 0.0
    %99 = vmatprep.subr.mxu0 0.0
    %100 = vmatpush1.msra.mxu0 0.0
    %101 = vmatprep.subr.mxu0 0.0
    %102 = vmatpush1.msra.mxu0 0.0
    %103 = vmatprep.mubr.f32.mxu0 0.0
    %104 = vmatmul.mubr.f32.gmra.mrb[0].mxu0 %v15
    %v105 = vpop.f32.mrb[0].mxu0
    %v106 = vadd.f32 %v37, %v105
    %v107 = vpop.f32.mrb[0].mxu0
    %108 = vdwg.mxu0
    %109 = vst [vmem:[#allocation2] sm:$0xff] %v106
    // Predicated region
    $region14: #{fused_multi_head.1} parent=1 // pred_check
      _
    $region15: #{fused_multi_head.1} parent=1 // pred_check_branch
      %111 = sbr.rel (0) target = $region17
    $region16: #{fused_multi_head.1} parent=1 // pred_region
      %s113 = ssub.s32 128, 128
      %114 = vsyncadd [#allocation3], %s113
      %s116 = sshll.u32 [#allocation2], 4
      %s117 = int_to_ptr.vmem [resolvable:$true] %s116
      %119 = dma.vmem_to_hbm [thread:$0]  %s117, 128, %s3, [#allocation3]
    $region17: #{fused_multi_head.1} parent=1 // pred_fallthru
      _
    // Predicated region
    $region18: #{fused_multi_head.1} parent=1 // pred_check
      _
    $region19: #{fused_multi_head.1} parent=1 // pred_check_branch
      %121 = sbr.rel (0) target = $region21
    $region20: #{fused_multi_head.1} parent=1 // pred_region
      %122 = dma.done [#allocation3], 128
    $region21: #{fused_multi_head.1} parent=1 // pred_fallthru
      _
    %123 = vsyncpa [#allocation3], 1

</llo_original>
